<compile_context>
chip_gen: v5e
topology: v5e:2x2
jax: 0.10.0
libtpu: 0.0.40
codegen_flags: <defaults>
</compile_context>

<pallas_src>
import functools

import jax
import jax.numpy as jnp
from jax.experimental import pallas as pl
from jax.experimental.pallas import tpu as pltpu

HIDDEN = 64


def _round_up(n, m):
    return ((n + m - 1) // m) * m


def mlp_kernel(x_ref, w1_ref, b1_ref, w2_ref, b2_ref, w3_ref, b3_ref, o_ref):
    # In-kernel f32 -> bf16 cast of the streamed batch tile (free on the VPU in
    # this memory-bound regime; removes a separate XLA pass over x in HBM).
    x = x_ref[...].astype(jnp.bfloat16)
    h1 = jnp.dot(x, w1_ref[...], preferred_element_type=jnp.float32) + b1_ref[...]
    h1 = jnp.maximum(h1, 0.0).astype(jnp.bfloat16)
    h2 = jnp.dot(h1, w2_ref[...], preferred_element_type=jnp.float32) + b2_ref[...]
    h2 = jnp.maximum(h2, 0.0).astype(jnp.bfloat16)
    out = jnp.dot(h2, w3_ref[...], preferred_element_type=jnp.float32) + b3_ref[...]
    o_ref[...] = out.astype(o_ref.dtype)


def _choose_tile_b(B, tile_b_default):
    # >= 2 grid steps when B is large enough (v7x has 2 TensorCores), tiles a
    # multiple of 16 (bf16 sublane pack), never (much) larger than B itself.
    half = _round_up(max(pl.cdiv(B, 2), 8), 16)
    tile_b = min(tile_b_default, half)
    tile_b = min(tile_b, _round_up(B, 8))
    return max(tile_b, 8)


def network_forward(x, packed, *, tile_b=2048):
    """x: (B, state_size) f32. packed: pre-packed params from pack_params()."""
    B, state_size = x.shape
    action_size = packed["w3"].shape[1]

    tile_b = _choose_tile_b(B, tile_b)
    grid = (pl.cdiv(B, tile_b),)
    const = lambda i: (0, 0)

    flops = 2 * B * (state_size * HIDDEN + HIDDEN * HIDDEN + HIDDEN * action_size)
    bytes_accessed = (
        x.size * 4
        + (packed["w1"].size + packed["w2"].size + packed["w3"].size) * 2
        + (packed["b1"].size + packed["b2"].size + packed["b3"].size) * 4
        + B * action_size * 2
    )

    return pl.pallas_call(
        mlp_kernel,
        out_shape=jax.ShapeDtypeStruct((B, action_size), jnp.bfloat16),
        grid=grid,
        in_specs=[
            pl.BlockSpec((tile_b, state_size), lambda i: (i, 0)),   # x: streamed
            pl.BlockSpec((state_size, HIDDEN), const),              # w1: resident
            pl.BlockSpec((1, HIDDEN), const),                       # b1
            pl.BlockSpec((HIDDEN, HIDDEN), const),                  # w2
            pl.BlockSpec((1, HIDDEN), const),                       # b2
            pl.BlockSpec((HIDDEN, action_size), const),             # w3 (narrow head)
            pl.BlockSpec((1, action_size), const),                  # b3
        ],
        out_specs=pl.BlockSpec((tile_b, action_size), lambda i: (i, 0)),
        compiler_params=pltpu.CompilerParams(
            # parallel batch axis: shards grid steps across v7x's 2 TCs.
            # (If tile_b is ever pushed past ~8192 rows, also set
            #  vmem_limit_bytes here for v7x's smaller 64 MiB VMEM.)
            dimension_semantics=("parallel",)),
        cost_estimate=pl.CostEstimate(
            flops=flops, transcendentals=0, bytes_accessed=bytes_accessed),
    )(x, packed["w1"], packed["b1"], packed["w2"], packed["b2"],
      packed["w3"], packed["b3"])


# jitted entry point: only the pallas_call is dispatched per forward call.
network_forward_jit = jax.jit(
    functools.partial(network_forward), static_argnames=("tile_b",))


def pack_params(params):
    """One-time param packing: bf16 matmul operands, f32 (1, N) biases."""
    return dict(
        w1=params["w1"].astype(jnp.bfloat16),
        b1=params["b1"].reshape(1, -1).astype(jnp.float32),
        w2=params["w2"].astype(jnp.bfloat16),
        b2=params["b2"].reshape(1, -1).astype(jnp.float32),
        w3=params["w3"].astype(jnp.bfloat16),
        b3=params["b3"].reshape(1, -1).astype(jnp.float32),
    )


def init_params(key, state_size, action_size):
    """Deterministic init mimicking nn.Linear's uniform(-1/sqrt(fan_in), +)."""
    def linear(k, fan_in, fan_out):
        kw, kb = jax.random.split(k)
        bound = 1.0 / jnp.sqrt(jnp.float32(fan_in))
        # stored as (in, out) so the kernel computes x @ W
        w = jax.random.uniform(kw, (fan_in, fan_out), jnp.float32, -bound, bound)
        b = jax.random.uniform(kb, (1, fan_out), jnp.float32, -bound, bound)
        return w, b

    k1, k2, k3 = jax.random.split(key, 3)
    w1, b1 = linear(k1, state_size, HIDDEN)
    w2, b2 = linear(k2, HIDDEN, HIDDEN)
    w3, b3 = linear(k3, HIDDEN, action_size)
    return dict(w1=w1, b1=b1, w2=w2, b2=b2, w3=w3, b3=b3)


def network_ref(x, p):
    h1 = jnp.maximum(x @ p["w1"] + p["b1"], 0.0)
    h2 = jnp.maximum(h1 @ p["w2"] + p["b2"], 0.0)
    return h2 @ p["w3"] + p["b3"]


if __name__ == "__main__":
    state_size = 20
    action_size = 4
    batch = 8

    key = jax.random.PRNGKey(0)
    k_params, k_x = jax.random.split(key)
    params = init_params(k_params, state_size, action_size)
    packed = pack_params(params)
    x = jax.random.normal(k_x, (batch, state_size), jnp.float32)

    out = network_forward_jit(x, packed)
    out = jax.block_until_ready(out)

    ref = network_ref(x, params)
    assert out.shape == (batch, action_size)
    assert out.dtype == jnp.bfloat16
    # bf16 matmul operands + bf16 output (f32 accumulation) => loosened tol.
    err = jnp.max(jnp.abs(out.astype(jnp.float32) - ref))
    assert jnp.allclose(out.astype(jnp.float32), ref, atol=3e-2, rtol=3e-2), (
        f"max abs err {err}")
    print("KERNEL_OK")
</pallas_src>

<mosaic_0001>
module attributes {stable_mosaic.version = 11 : i64} {
  func.func @mlp_kernel(%arg0: i32, %arg1: memref<8x20xf32, #tpu.memory_space<vmem>>, %arg2: memref<20x64xbf16, #tpu.memory_space<vmem>>, %arg3: memref<1x64xf32, #tpu.memory_space<vmem>>, %arg4: memref<64x64xbf16, #tpu.memory_space<vmem>>, %arg5: memref<1x64xf32, #tpu.memory_space<vmem>>, %arg6: memref<64x4xbf16, #tpu.memory_space<vmem>>, %arg7: memref<1x4xf32, #tpu.memory_space<vmem>>, %arg8: memref<8x4xbf16, #tpu.memory_space<vmem>>) attributes {dimension_semantics = [#tpu.dimension_semantics<parallel>], iteration_bounds = array<i64: 1>, scalar_prefetch = 0 : i64, scratch_operands = 0 : i64, tpu.core_type = #tpu.core_type<tc>, window_params = [{transform_indices = @transform_0, window_bounds = array<i64: 8, 20>}, {pipeline_mode = #tpu.pipeline_mode<synchronous>, transform_indices = @transform_1, window_bounds = array<i64: 20, 64>}, {pipeline_mode = #tpu.pipeline_mode<synchronous>, transform_indices = @transform_2, window_bounds = array<i64: 1, 64>}, {pipeline_mode = #tpu.pipeline_mode<synchronous>, transform_indices = @transform_3, window_bounds = array<i64: 64, 64>}, {pipeline_mode = #tpu.pipeline_mode<synchronous>, transform_indices = @transform_4, window_bounds = array<i64: 1, 64>}, {pipeline_mode = #tpu.pipeline_mode<synchronous>, transform_indices = @transform_5, window_bounds = array<i64: 64, 4>}, {pipeline_mode = #tpu.pipeline_mode<synchronous>, transform_indices = @transform_6, window_bounds = array<i64: 1, 4>}, {transform_indices = @transform_7, window_bounds = array<i64: 8, 4>}]} {
    %c0 = arith.constant 0 : index
    %c0_0 = arith.constant 0 : index
    %0 = vector.load %arg1[%c0, %c0_0] : memref<8x20xf32, #tpu.memory_space<vmem>>, vector<8x20xf32>
    %1 = arith.truncf %0 : vector<8x20xf32> to vector<8x20xbf16>
    %c0_1 = arith.constant 0 : index
    %c0_2 = arith.constant 0 : index
    %2 = vector.load %arg2[%c0_1, %c0_2] : memref<20x64xbf16, #tpu.memory_space<vmem>>, vector<20x64xbf16>
    %cst = arith.constant dense<0.000000e+00> : vector<8x64xf32>
    %3 = tpu.matmul %1, %2, %cst {dimension_numbers = #tpu.dot_dimension_numbers<[1], [0], [0], [1], [0, 0, 1, 1], [], []>} : vector<8x20xbf16>, vector<20x64xbf16>, vector<8x64xf32> -> vector<8x64xf32>
    %c0_3 = arith.constant 0 : index
    %c0_4 = arith.constant 0 : index
    %4 = vector.load %arg3[%c0_3, %c0_4] : memref<1x64xf32, #tpu.memory_space<vmem>>, vector<1x64xf32>
    %5 = vector.broadcast %4 : vector<1x64xf32> to vector<8x64xf32>
    %6 = arith.addf %3, %5 : vector<8x64xf32>
    %cst_5 = arith.constant 0.000000e+00 : f32
    %7 = vector.broadcast %cst_5 : f32 to vector<8x64xf32>
    %8 = arith.maximumf %6, %7 : vector<8x64xf32>
    %9 = arith.truncf %8 : vector<8x64xf32> to vector<8x64xbf16>
    %c0_6 = arith.constant 0 : index
    %c0_7 = arith.constant 0 : index
    %10 = vector.load %arg4[%c0_6, %c0_7] : memref<64x64xbf16, #tpu.memory_space<vmem>>, vector<64x64xbf16>
    %cst_8 = arith.constant dense<0.000000e+00> : vector<8x64xf32>
    %11 = tpu.matmul %9, %10, %cst_8 {dimension_numbers = #tpu.dot_dimension_numbers<[1], [0], [0], [1], [0, 0, 1, 1], [], []>} : vector<8x64xbf16>, vector<64x64xbf16>, vector<8x64xf32> -> vector<8x64xf32>
    %c0_9 = arith.constant 0 : index
    %c0_10 = arith.constant 0 : index
    %12 = vector.load %arg5[%c0_9, %c0_10] : memref<1x64xf32, #tpu.memory_space<vmem>>, vector<1x64xf32>
    %13 = vector.broadcast %12 : vector<1x64xf32> to vector<8x64xf32>
    %14 = arith.addf %11, %13 : vector<8x64xf32>
    %cst_11 = arith.constant 0.000000e+00 : f32
    %15 = vector.broadcast %cst_11 : f32 to vector<8x64xf32>
    %16 = arith.maximumf %14, %15 : vector<8x64xf32>
    %17 = arith.truncf %16 : vector<8x64xf32> to vector<8x64xbf16>
    %c0_12 = arith.constant 0 : index
    %c0_13 = arith.constant 0 : index
    %18 = vector.load %arg6[%c0_12, %c0_13] : memref<64x4xbf16, #tpu.memory_space<vmem>>, vector<64x4xbf16>
    %cst_14 = arith.constant dense<0.000000e+00> : vector<8x4xf32>
    %19 = tpu.matmul %17, %18, %cst_14 {dimension_numbers = #tpu.dot_dimension_numbers<[1], [0], [0], [1], [0, 0, 1, 1], [], []>} : vector<8x64xbf16>, vector<64x4xbf16>, vector<8x4xf32> -> vector<8x4xf32>
    %c0_15 = arith.constant 0 : index
    %c0_16 = arith.constant 0 : index
    %20 = vector.load %arg7[%c0_15, %c0_16] : memref<1x4xf32, #tpu.memory_space<vmem>>, vector<1x4xf32>
    %21 = vector.broadcast %20 : vector<1x4xf32> to vector<8x4xf32>
    %22 = arith.addf %19, %21 : vector<8x4xf32>
    %23 = arith.truncf %22 : vector<8x4xf32> to vector<8x4xbf16>
    %c0_17 = arith.constant 0 : index
    %c0_18 = arith.constant 0 : index
    %24 = vector.load %arg8[%c0_17, %c0_18] : memref<8x4xbf16, #tpu.memory_space<vmem>>, vector<8x4xbf16>
    tpu.vector_store %arg8[%c0_17, %c0_18], %23 {strides = array<i32>} : memref<8x4xbf16, #tpu.memory_space<vmem>>, vector<8x4xbf16>,
    return
  }
  func.func @transform_0(%arg0: i32) -> (i32, i32) {
    %c0_i32 = arith.constant 0 : i32
    %c0_i32_0 = arith.constant 0 : i32
    return %arg0, %c0_i32 : i32, i32
  }
  func.func @transform_1(%arg0: i32) -> (i32, i32) {
    %c0_i32 = arith.constant 0 : i32
    %c0_i32_0 = arith.constant 0 : i32
    %c0_i32_1 = arith.constant 0 : i32
    return %c0_i32, %c0_i32_0 : i32, i32
  }
  func.func @transform_2(%arg0: i32) -> (i32, i32) {
    %c0_i32 = arith.constant 0 : i32
    %c0_i32_0 = arith.constant 0 : i32
    %c0_i32_1 = arith.constant 0 : i32
    return %c0_i32, %c0_i32_0 : i32, i32
  }
  func.func @transform_3(%arg0: i32) -> (i32, i32) {
    %c0_i32 = arith.constant 0 : i32
    %c0_i32_0 = arith.constant 0 : i32
    %c0_i32_1 = arith.constant 0 : i32
    return %c0_i32, %c0_i32_0 : i32, i32
  }
  func.func @transform_4(%arg0: i32) -> (i32, i32) {
    %c0_i32 = arith.constant 0 : i32
    %c0_i32_0 = arith.constant 0 : i32
    %c0_i32_1 = arith.constant 0 : i32
    return %c0_i32, %c0_i32_0 : i32, i32
  }
  func.func @transform_5(%arg0: i32) -> (i32, i32) {
    %c0_i32 = arith.constant 0 : i32
    %c0_i32_0 = arith.constant 0 : i32
    %c0_i32_1 = arith.constant 0 : i32
    return %c0_i32, %c0_i32_0 : i32, i32
  }
  func.func @transform_6(%arg0: i32) -> (i32, i32) {
    %c0_i32 = arith.constant 0 : i32
    %c0_i32_0 = arith.constant 0 : i32
    %c0_i32_1 = arith.constant 0 : i32
    return %c0_i32, %c0_i32_0 : i32, i32
  }
  func.func @transform_7(%arg0: i32) -> (i32, i32) {
    %c0_i32 = arith.constant 0 : i32
    %c0_i32_0 = arith.constant 0 : i32
    return %arg0, %c0_i32 : i32, i32
  }
}

</mosaic_0001>

<llo_original>
// kernel: network_forward.1
$region0: #{network_forward.1}
  #allocation0 [shape = 'u32[]', space=smem, size = 0x4, offset = 0x4, fixed_abs, tag = 'smem constant byte address 0x4 - core index']
  #allocation1 [shape = 'u32[72,128]{1,0:T(1,128)}', space=vmem, size = 0x9000, scoped, tag = 'internal scratch']
  %s0 = inlined_call_operand.hbm [shape: f32[8,20], index: 0, kind: input, shape index: {}]
  %s1 = inlined_call_operand.hbm [shape: bf16[20,64], index: 1, kind: input, shape index: {}]
  %s2 = inlined_call_operand.vmem [shape: f32[1,64], index: 2, kind: input, shape index: {}]
  %s3 = inlined_call_operand.vmem [shape: bf16[64,64], index: 3, kind: input, shape index: {}]
  %s4 = inlined_call_operand.vmem [shape: f32[1,64], index: 4, kind: input, shape index: {}]
  %s5 = inlined_call_operand.vmem [shape: bf16[64,4], index: 5, kind: input, shape index: {}]
  %s6 = inlined_call_operand.vmem [shape: f32[1,4], index: 6, kind: input, shape index: {}]
  %s7 = inlined_call_operand.vmem [shape: bf16[8,4], index: 7, kind: output, shape index: {}]
  %s8 = sld [smem:[#allocation0]]
  $region46: #{network_forward.1} parent=0
    _
  %s10 = ssub.s32 1, %s8
  %s11 = scalar_select 0, %s10, %s8
  $region1: #{network_forward.1} parent=0
    #allocation2 [shape = 'u8[4096]{0}', space=vmem, size = 0x1000, scoped, tag = 'input window, operand 0, single buffered']
    #allocation3 [shape = 's32[1]{0}', space=sflag, size = 0x4, scoped, tag = 'scoped memory for network_forward.1']
    #allocation4 [shape = 'u8[6144]{0}', space=vmem, size = 0x1800, scoped, tag = 'input window, operand 1, single buffered']
    #allocation5 [shape = 's32[1]{0}', space=sflag, size = 0x4, scoped, tag = 'scoped memory for network_forward.1']
    %12 = vsyncpa [#allocation3], 0
    %13 = vsyncpa [#allocation5], 0
    // Predicated region
    $region2: #{network_forward.1} parent=1 // pred_check
      _
    $region3: #{network_forward.1} parent=1 // pred_check_branch
      %15 = sbr.rel (0) target = $region5
    $region4: #{network_forward.1} parent=1 // pred_region
      %17 = vsyncadd [#allocation3], 0
      %s19 = sshll.u32 %s0, 4
      %s20 = int_to_ptr.hbm [resolvable:$true] %s19
      %s21 = sshll.u32 [#allocation2], 4
      %s22 = int_to_ptr.vmem [resolvable:$true] %s21
      %24 = dma.hbm_to_vmem [thread:$0]  %s20, 128, %s22, [#allocation3]
    $region5: #{network_forward.1} parent=1 // pred_fallthru
      _
    // Predicated region
    $region6: #{network_forward.1} parent=1 // pred_check
      _
    $region7: #{network_forward.1} parent=1 // pred_check_branch
      %26 = sbr.rel (0) target = $region9
    $region8: #{network_forward.1} parent=1 // pred_region
      %28 = vsyncadd [#allocation5], 0
      %s29 = sshll.u32 %s1, 4
      %s30 = int_to_ptr.hbm [resolvable:$true] %s29
      %s31 = sshll.u32 [#allocation4], 4
      %s32 = int_to_ptr.vmem [resolvable:$true] %s31
      %37 = dma.hbm_to_vmem [thread:$0]  %s30, 192, %s32, [#allocation5], 64, 64, 4
    $region9: #{network_forward.1} parent=1 // pred_fallthru
      _
    // Predicated region
    $region10: #{network_forward.1} parent=1 // pred_check
      _
    $region11: #{network_forward.1} parent=1 // pred_check_branch
      %39 = sbr.rel (0) target = $region13
    $region12: #{network_forward.1} parent=1 // pred_region
      _
    $region13: #{network_forward.1} parent=1 // pred_fallthru
      _
    // Predicated region
    $region14: #{network_forward.1} parent=1 // pred_check
      _
    $region15: #{network_forward.1} parent=1 // pred_check_branch
      %41 = sbr.rel (0) target = $region17
    $region16: #{network_forward.1} parent=1 // pred_region
      _
    $region17: #{network_forward.1} parent=1 // pred_fallthru
      _
    // Predicated region
    $region18: #{network_forward.1} parent=1 // pred_check
      _
    $region19: #{network_forward.1} parent=1 // pred_check_branch
      %43 = sbr.rel (0) target = $region21
    $region20: #{network_forward.1} parent=1 // pred_region
      _
    $region21: #{network_forward.1} parent=1 // pred_fallthru
      _
    // Predicated region
    $region22: #{network_forward.1} parent=1 // pred_check
      _
    $region23: #{network_forward.1} parent=1 // pred_check_branch
      %45 = sbr.rel (0) target = $region25
    $region24: #{network_forward.1} parent=1 // pred_region
      _
    $region25: #{network_forward.1} parent=1 // pred_fallthru
      _
    // Predicated region
    $region26: #{network_forward.1} parent=1 // pred_check
      _
    $region27: #{network_forward.1} parent=1 // pred_check_branch
      %47 = sbr.rel (0) target = $region29
    $region28: #{network_forward.1} parent=1 // pred_region
      _
    $region29: #{network_forward.1} parent=1 // pred_fallthru
      _
    // Predicated region
    $region30: #{network_forward.1} parent=1 // pred_check
      _
    $region31: #{network_forward.1} parent=1 // pred_check_branch
      %49 = sbr.rel (0) target = $region33
    $region32: #{network_forward.1} parent=1 // pred_region
      %51 = dma.done [#allocation3], 128
    $region33: #{network_forward.1} parent=1 // pred_fallthru
      _
    // Predicated region
    $region34: #{network_forward.1} parent=1 // pred_check
      _
    $region35: #{network_forward.1} parent=1 // pred_check_branch
      %53 = sbr.rel (0) target = $region37
    $region36: #{network_forward.1} parent=1 // pred_region
      %55 = dma.done [#allocation5], 192
    $region37: #{network_forward.1} parent=1 // pred_fallthru
      _
    %v57 = vld [vmem:[#allocation2] sm:$0xff]
    %v58 = vpack.c.bf16 %v57, %v57
    %v59 = vld [vmem:[#allocation4] sm:$0xf]
    %v60 = vld [vmem:[#allocation4 + $0x4] sm:$0xf]
    %v61 = vld [vmem:[#allocation4 + $0x8] sm:$0x3]
    %v62 = vld [vmem:[%s2] sm:$0x1]
    %v64 = vperm.slane %v62, 0
    %v69 = vunpack.c.l.b16 %v59
    %v70 = vunpack.c.l.b16 %v60
    %v71 = vunpack.c.l.b16 %v61
    %v72 = vpack.c.b16 %v70, %v69
    %v73 = vpack.c.b16 %v71, %v71
    %vm75 = vcmask 162816
    %v77 = vsel %vm75, %v58, 0
    %vm79 = vcmask 1041408
    %v81 = vsel %vm79, %v73, 0
    %83 = vmatpush.bf16.msra.mxu0 0
    %84 = vmatpush.bf16.msra.mxu0 0
    %85 = vmatpush.bf16.msra.mxu0 0
    %86 = vmatpush.bf16.msra.mxu0 0
    %87 = vmatpush.bf16.msra.mxu0 0
    %88 = vmatpush.bf16.msra.mxu0 0
    %89 = vmatpush.bf16.msra.mxu0 %v81
    %90 = vmatpush.bf16.msra.mxu0 %v72
    %91 = vmatmul.bf16.gmra.mxu0 %v77
    %v92 = vpop.f32.mrf.mxu0
    %v93 = vadd.f32 %v64, %v92
    %v94 = vpop.f32.mrf.mxu0
    %95 = vdwg.mxu0
    %v96 = vmax.f32 %v93, 0.0
    %v97 = vpack.c.bf16 %v96, %v96
    %v98 = vld [vmem:[%s3] sm:$0xf]
    %v99 = vld [vmem:[%s3 + $0x4] sm:$0xf]
    %v100 = vld [vmem:[%s3 + $0x8] sm:$0xf]
    %v101 = vld [vmem:[%s3 + $0xc] sm:$0xf]
    %v102 = vld [vmem:[%s3 + $0x10] sm:$0xf]
    %v103 = vld [vmem:[%s3 + $0x14] sm:$0xf]
    %v104 = vld [vmem:[%s3 + $0x18] sm:$0xf]
    %v105 = vld [vmem:[%s3 + $0x1c] sm:$0xf]
    %v106 = vld [vmem:[%s4] sm:$0x1]
    %v108 = vperm.slane %v106, 0
    %v118 = vunpack.c.l.b16 %v98
    %v119 = vunpack.c.l.b16 %v99
    %v120 = vunpack.c.l.b16 %v100
    %v121 = vunpack.c.l.b16 %v101
    %v122 = vunpack.c.l.b16 %v102
    %v123 = vunpack.c.l.b16 %v103
    %v124 = vunpack.c.l.b16 %v104
    %v125 = vunpack.c.l.b16 %v105
    %v126 = vpack.c.b16 %v119, %v118
    %v127 = vpack.c.b16 %v121, %v120
    %v128 = vpack.c.b16 %v123, %v122
    %v129 = vpack.c.b16 %v125, %v124
    %vm134 = vcmask 523264
    %v136 = vsel %vm134, %v97, 0
    %138 = vmatpush.bf16.msra.mxu0 0
    %139 = vmatpush.bf16.msra.mxu0 0
    %140 = vmatpush.bf16.msra.mxu0 0
    %141 = vmatpush.bf16.msra.mxu0 0
    %142 = vmatpush.bf16.msra.mxu0 %v129
    %143 = vmatpush.bf16.msra.mxu0 %v128
    %144 = vmatpush.bf16.msra.mxu0 %v127
    %145 = vmatpush.bf16.msra.mxu0 %v126
    %146 = vmatmul.bf16.gmra.mxu0 %v136
    %v147 = vpop.f32.mrf.mxu0
    %v148 = vadd.f32 %v108, %v147
    %v149 = vpop.f32.mrf.mxu0
    %150 = vdwg.mxu0
    %v151 = vmax.f32 %v148, 0.0
    %v152 = vpack.c.bf16 %v151, %v151
    %v153 = vld [vmem:[%s5] sm:$0xf]
    %v154 = vld [vmem:[%s5 + $0x4] sm:$0xf]
    %v155 = vld [vmem:[%s5 + $0x8] sm:$0xf]
    %v156 = vld [vmem:[%s5 + $0xc] sm:$0xf]
    %v157 = vld [vmem:[%s5 + $0x10] sm:$0xf]
    %v158 = vld [vmem:[%s5 + $0x14] sm:$0xf]
    %v159 = vld [vmem:[%s5 + $0x18] sm:$0xf]
    %v160 = vld [vmem:[%s5 + $0x1c] sm:$0xf]
    %v161 = vld [vmem:[%s6] sm:$0x1]
    %v163 = vperm.slane %v161, 0
    %v173 = vunpack.c.l.b16 %v153
    %v174 = vunpack.c.l.b16 %v154
    %v175 = vunpack.c.l.b16 %v155
    %v176 = vunpack.c.l.b16 %v156
    %v177 = vunpack.c.l.b16 %v157
    %v178 = vunpack.c.l.b16 %v158
    %v179 = vunpack.c.l.b16 %v159
    %v180 = vunpack.c.l.b16 %v160
    %v181 = vpack.c.b16 %v174, %v173
    %v182 = vpack.c.b16 %v176, %v175
    %v183 = vpack.c.b16 %v178, %v177
    %v184 = vpack.c.b16 %v180, %v179
    %v190 = vsel %vm134, %v152, 0
    %192 = vmatpush.bf16.msra.mxu0 0
    %193 = vmatpush.bf16.msra.mxu0 0
    %194 = vmatpush.bf16.msra.mxu0 0
    %195 = vmatpush.bf16.msra.mxu0 0
    %196 = vmatpush.bf16.msra.mxu0 %v184
    %197 = vmatpush.bf16.msra.mxu0 %v183
    %198 = vmatpush.bf16.msra.mxu0 %v182
    %199 = vmatpush.bf16.msra.mxu0 %v181
    %200 = vmatmul.bf16.gmra.mxu0 %v190
    %v201 = vpop.f32.mrf.mxu0
    %v202 = vadd.f32 %v163, %v201
    %v203 = vpop.f32.mrf.mxu0
    %204 = vdwg.mxu0
    %v205 = vpack.c.bf16 %v202, %v202
    %vm206 = vcmask 27648
    %207 = vst.msk [vmem:[%s7] sm:$0xf] %vm206, %v205
    // Predicated region
    $region38: #{network_forward.1} parent=1 // pred_check
      _
    $region39: #{network_forward.1} parent=1 // pred_check_branch
      %209 = sbr.rel (0) target = $region41
    $region40: #{network_forward.1} parent=1 // pred_region
      _
    $region41: #{network_forward.1} parent=1 // pred_fallthru
      _
    // Predicated region
    $region42: #{network_forward.1} parent=1 // pred_check
      _
    $region43: #{network_forward.1} parent=1 // pred_check_branch
      %211 = sbr.rel (0) target = $region45
    $region44: #{network_forward.1} parent=1 // pred_region
      _
    $region45: #{network_forward.1} parent=1 // pred_fallthru
      _
    %212 = vsyncpa [#allocation3], 1
    %213 = vsyncpa [#allocation5], 1

</llo_original>
